<compile_context>
chip_gen: v6e
topology: v6e:2x2x1
jax: 0.10.0
libtpu: 0.0.40
codegen_flags: <defaults>
</compile_context>

<pallas_src>
import functools

import jax
import jax.numpy as jnp
from jax.experimental import pallas as pl
from jax.experimental.pallas import tpu as pltpu

EPS = 1e-6
VMEM_LIMIT_BYTES = 48 * 1024 * 1024  # safe on v5e/v6e (128 MiB) and v7x (64 MiB)
_ROW_TILE_TARGET = 512               # ~85% of HBM roofline for mem-bound kernels
_TILE_VMEM_BUDGET = 40 * 1024 * 1024  # footprint budget for double-buffered operands


def _row_tile(rows: int, features: int, itemsize: int = 4) -> int:
    """Pick a row-tile so ~8 double-buffered (TR, F) operands fit in VMEM."""
    if rows <= 8:
        return rows
    tr = min(rows, _ROW_TILE_TARGET)
    while tr > 8 and 8 * tr * features * itemsize > _TILE_VMEM_BUDGET:
        tr //= 2
    if tr >= rows:
        return rows
    return max(8, (tr // 8) * 8)


def _compiler_params():
    return pltpu.CompilerParams(
        dimension_semantics=("parallel",),
        vmem_limit_bytes=VMEM_LIMIT_BYTES,
    )


def _dropout_threshold(p: float) -> int:
    # keep iff bits >= threshold  =>  P(keep) = 1 - p
    return min(int(round(p * 4294967296.0)), 4294967295)


# ---------------------------------------------------------------------------
# Kernel 1: LayerNorm over the feature (last) axis.
# ---------------------------------------------------------------------------
def _layernorm_kernel(x_ref, alpha_ref, bias_ref, o_ref, *, features):
    x = x_ref[...].astype(jnp.float32)
    mean = jnp.mean(x, axis=-1, keepdims=True)
    diff = x - mean
    # unbiased variance (torch.std default, correction=1)
    denom = float(max(features - 1, 1))
    var = jnp.sum(diff * diff, axis=-1, keepdims=True) * (1.0 / denom)
    # one divide per ROW instead of per element; rest is broadcast multiplies
    inv = 1.0 / (jnp.sqrt(var) + EPS)
    y = diff * inv * alpha_ref[...].astype(jnp.float32) + bias_ref[...].astype(jnp.float32)
    o_ref[...] = y.astype(o_ref.dtype)


def layernorm(x2d, alpha, bias, *, tr):
    rows, features = x2d.shape
    row_spec = pl.BlockSpec((tr, features), lambda i: (i, 0))
    param_spec = pl.BlockSpec((1, features), lambda i: (0, 0))
    return pl.pallas_call(
        functools.partial(_layernorm_kernel, features=features),
        out_shape=jax.ShapeDtypeStruct((rows, features), x2d.dtype),
        grid=(pl.cdiv(rows, tr),),
        in_specs=[row_spec, param_spec, param_spec],
        out_specs=row_spec,
        compiler_params=_compiler_params(),
    )(x2d, alpha.reshape(1, features), bias.reshape(1, features))


# ---------------------------------------------------------------------------
# Kernel 2: residual add + (inverted) dropout via uint32 threshold compare.
# ---------------------------------------------------------------------------
def _residual_dropout_kernel(x_ref, y_ref, bits_ref, o_ref, *, threshold, scale):
    keep = bits_ref[...] >= jnp.uint32(threshold)
    y = y_ref[...]
    # select folds the 1/(1-p) scale; stays in the native dtype (bf16-friendly)
    gate = jnp.where(keep, scale, 0.0).astype(y.dtype)
    o_ref[...] = x_ref[...] + y * gate


def _residual_add_kernel(x_ref, y_ref, o_ref):
    o_ref[...] = x_ref[...] + y_ref[...]


def residual_dropout_add(x2d, y2d, bits, p, train, *, tr):
    rows, features = x2d.shape
    row_spec = pl.BlockSpec((tr, features), lambda i: (i, 0))
    grid = (pl.cdiv(rows, tr),)
    out_shape = jax.ShapeDtypeStruct((rows, features), x2d.dtype)
    cp = _compiler_params()

    if train and p > 0.0:
        kern = functools.partial(
            _residual_dropout_kernel,
            threshold=_dropout_threshold(p),
            scale=1.0 / (1.0 - p),
        )
        return pl.pallas_call(
            kern,
            out_shape=out_shape,
            grid=grid,
            in_specs=[row_spec, row_spec, row_spec],
            out_specs=row_spec,
            compiler_params=cp,
        )(x2d, y2d, bits)

    return pl.pallas_call(
        _residual_add_kernel,
        out_shape=out_shape,
        grid=grid,
        in_specs=[row_spec, row_spec],
        out_specs=row_spec,
        compiler_params=cp,
    )(x2d, y2d)


# ---------------------------------------------------------------------------
# Module wrapper (mirrors the PyTorch ResidualConnection).
# ---------------------------------------------------------------------------
class ResidualConnection:
    def __init__(self, features: int, dropout: float, seed: int = 0):
        self.features = features
        self.p = float(dropout)
        self.seed = int(seed)
        # LayerNormalisation parameters: alpha=ones, bias=zeros (deterministic init)
        self.alpha = jnp.ones((features,), jnp.float32)
        self.bias = jnp.zeros((features,), jnp.float32)

    def __call__(self, x, sublayer, train: bool = True, rng_key=None):
        B, S, F = x.shape
        assert F == self.features
        rows = B * S
        # TODO(synk): for F < 128 a lane-dense layout (fold rows into the last
        # dim / pad F to 128) would avoid masked partial stores; typical
        # transformer feature dims (>=512) don't need it.
        tr = _row_tile(rows, F)

        x2d = x.reshape(rows, F)
        normalized = layernorm(x2d, self.alpha, self.bias, tr=tr).reshape(B, S, F)

        sublayer_output = sublayer(normalized)
        if not isinstance(sublayer_output, jax.Array):
            raise TypeError(
                f"Sublayer must return a jax.Array, got {type(sublayer_output)}"
            )
        y2d = sublayer_output.reshape(rows, F)

        bits = None
        if train and self.p > 0.0:
            key = rng_key if rng_key is not None else jax.random.PRNGKey(self.seed)
            bits = jax.random.bits(key, (rows, F), dtype=jnp.uint32)

        out2d = residual_dropout_add(x2d, y2d, bits, self.p, train, tr=tr)
        return out2d.reshape(B, S, F)


# ---------------------------------------------------------------------------
# Pure-JAX references for correctness checks.
# ---------------------------------------------------------------------------
def _reference_layernorm(x, alpha, bias):
    mean = jnp.mean(x, axis=-1, keepdims=True)
    diff = x - mean
    var = jnp.sum(diff * diff, axis=-1, keepdims=True) / max(x.shape[-1] - 1, 1)
    std = jnp.sqrt(var)
    return alpha * (diff / (std + EPS)) + bias


def _reference_no_dropout(x, alpha, bias, sublayer):
    return x + sublayer(_reference_layernorm(x, alpha, bias))


def _reference_train(x, alpha, bias, sublayer, p, key):
    B, S, F = x.shape
    sub_out = sublayer(_reference_layernorm(x, alpha, bias))
    bits = jax.random.bits(key, (B * S, F), dtype=jnp.uint32).reshape(B, S, F)
    keep = bits >= jnp.uint32(_dropout_threshold(p))
    return x + jnp.where(keep, sub_out * (1.0 / (1.0 - p)), 0.0)


if __name__ == "__main__":
    B, S, F = 2, 8, 32
    key = jax.random.PRNGKey(0)
    kx, kw, kb = jax.random.split(key, 3)

    x = jax.random.normal(kx, (B, S, F), dtype=jnp.float32)

    # Deterministic "sublayer": a small linear layer + ReLU (plain-JAX glue,
    # since the sublayer is an arbitrary callable passed into forward()).
    W = jax.random.normal(kw, (F, F), dtype=jnp.float32) * 0.05
    b = jax.random.normal(kb, (F,), dtype=jnp.float32) * 0.05
    sublayer = lambda z: jax.nn.relu(jnp.dot(z, W) + b)

    block = ResidualConnection(features=F, dropout=0.1, seed=1234)

    # Correctness check with dropout off (eval mode).
    out_eval = block(x, sublayer, train=False)
    ref_eval = _reference_no_dropout(x, block.alpha, block.bias, sublayer)
    assert jnp.allclose(out_eval, ref_eval, atol=1e-4, rtol=1e-4), "eval mismatch vs reference"

    # Training-mode run (dropout active, deterministic via the stored seed).
    out_train = block(x, sublayer, train=True)
    jax.block_until_ready(out_train)
    ref_train = _reference_train(
        x, block.alpha, block.bias, sublayer, block.p, jax.random.PRNGKey(block.seed)
    )
    assert jnp.allclose(out_train, ref_train, atol=1e-4, rtol=1e-4), "train mismatch vs reference"

    print("KERNEL_OK")
</pallas_src>

<mosaic_0001>
module attributes {stable_mosaic.version = 11 : i64} {
  func.func @_layernorm_kernel(%arg0: i32, %arg1: memref<16x32xf32, #tpu.memory_space<vmem>>, %arg2: memref<1x32xf32, #tpu.memory_space<vmem>>, %arg3: memref<1x32xf32, #tpu.memory_space<vmem>>, %arg4: memref<16x32xf32, #tpu.memory_space<vmem>>) attributes {dimension_semantics = [#tpu.dimension_semantics<parallel>], iteration_bounds = array<i64: 1>, scalar_prefetch = 0 : i64, scratch_operands = 0 : i64, tpu.core_type = #tpu.core_type<tc>, window_params = [{transform_indices = @transform_0, window_bounds = array<i64: 16, 32>}, {pipeline_mode = #tpu.pipeline_mode<synchronous>, transform_indices = @transform_1, window_bounds = array<i64: 1, 32>}, {pipeline_mode = #tpu.pipeline_mode<synchronous>, transform_indices = @transform_2, window_bounds = array<i64: 1, 32>}, {transform_indices = @transform_3, window_bounds = array<i64: 16, 32>}]} {
    %c0 = arith.constant 0 : index
    %c0_0 = arith.constant 0 : index
    %0 = vector.load %arg1[%c0, %c0_0] : memref<16x32xf32, #tpu.memory_space<vmem>>, vector<16x32xf32>
    %cst = arith.constant dense<0.000000e+00> : vector<16xf32>
    %1 = vector.multi_reduction <add>, %0, %cst [1] : vector<16x32xf32> to vector<16xf32>
    %2 = vector.shape_cast %1 : vector<16xf32> to vector<16x1xf32>
    %cst_1 = arith.constant 3.200000e+01 : f32
    %3 = vector.broadcast %cst_1 : f32 to vector<16x1xf32>
    %4 = arith.divf %2, %3 : vector<16x1xf32>
    %5 = vector.broadcast %4 : vector<16x1xf32> to vector<16x32xf32>
    %6 = arith.subf %0, %5 : vector<16x32xf32>
    %7 = arith.mulf %6, %6 : vector<16x32xf32>
    %cst_2 = arith.constant dense<0.000000e+00> : vector<16xf32>
    %8 = vector.multi_reduction <add>, %7, %cst_2 [1] : vector<16x32xf32> to vector<16xf32>
    %9 = vector.shape_cast %8 : vector<16xf32> to vector<16x1xf32>
    %cst_3 = arith.constant 0.0322580636 : f32
    %10 = vector.broadcast %cst_3 : f32 to vector<16x1xf32>
    %11 = arith.mulf %9, %10 : vector<16x1xf32>
    %12 = math.sqrt %11 : vector<16x1xf32>
    %cst_4 = arith.constant 9.99999997E-7 : f32
    %13 = vector.broadcast %cst_4 : f32 to vector<16x1xf32>
    %14 = arith.addf %12, %13 : vector<16x1xf32>
    %cst_5 = arith.constant 1.000000e+00 : f32
    %15 = vector.broadcast %cst_5 : f32 to vector<16x1xf32>
    %16 = arith.divf %15, %14 : vector<16x1xf32>
    %17 = vector.broadcast %16 : vector<16x1xf32> to vector<16x32xf32>
    %18 = arith.mulf %6, %17 : vector<16x32xf32>
    %c0_6 = arith.constant 0 : index
    %c0_7 = arith.constant 0 : index
    %19 = vector.load %arg2[%c0_6, %c0_7] : memref<1x32xf32, #tpu.memory_space<vmem>>, vector<1x32xf32>
    %20 = vector.broadcast %19 : vector<1x32xf32> to vector<16x32xf32>
    %21 = arith.mulf %18, %20 : vector<16x32xf32>
    %c0_8 = arith.constant 0 : index
    %c0_9 = arith.constant 0 : index
    %22 = vector.load %arg3[%c0_8, %c0_9] : memref<1x32xf32, #tpu.memory_space<vmem>>, vector<1x32xf32>
    %23 = vector.broadcast %22 : vector<1x32xf32> to vector<16x32xf32>
    %24 = arith.addf %21, %23 : vector<16x32xf32>
    %c0_10 = arith.constant 0 : index
    %c0_11 = arith.constant 0 : index
    %25 = vector.load %arg4[%c0_10, %c0_11] : memref<16x32xf32, #tpu.memory_space<vmem>>, vector<16x32xf32>
    tpu.vector_store %arg4[%c0_10, %c0_11], %24 {strides = array<i32>} : memref<16x32xf32, #tpu.memory_space<vmem>>, vector<16x32xf32>,
    return
  }
  func.func @transform_0(%arg0: i32) -> (i32, i32) {
    %c0_i32 = arith.constant 0 : i32
    %c0_i32_0 = arith.constant 0 : i32
    return %arg0, %c0_i32 : i32, i32
  }
  func.func @transform_1(%arg0: i32) -> (i32, i32) {
    %c0_i32 = arith.constant 0 : i32
    %c0_i32_0 = arith.constant 0 : i32
    %c0_i32_1 = arith.constant 0 : i32
    return %c0_i32, %c0_i32_0 : i32, i32
  }
  func.func @transform_2(%arg0: i32) -> (i32, i32) {
    %c0_i32 = arith.constant 0 : i32
    %c0_i32_0 = arith.constant 0 : i32
    %c0_i32_1 = arith.constant 0 : i32
    return %c0_i32, %c0_i32_0 : i32, i32
  }
  func.func @transform_3(%arg0: i32) -> (i32, i32) {
    %c0_i32 = arith.constant 0 : i32
    %c0_i32_0 = arith.constant 0 : i32
    return %arg0, %c0_i32 : i32, i32
  }
}

</mosaic_0001>

<llo_original>
// kernel: tpu_custom_call.1
$region0: #{tpu_custom_call.1}
  #allocation0 [shape = 'u32[]', space=smem, size = 0x4, offset = 0x4, fixed_abs, tag = 'smem constant byte address 0x4 - core index']
  #allocation1 [shape = 'u32[144,128]{1,0:T(1,128)}', space=vmem, size = 0x12000, scoped, tag = 'internal scratch']
  %s0 = inlined_call_operand.hbm [shape: f32[16,32], index: 0, kind: input, shape index: {}]
  %s1 = inlined_call_operand.vmem [shape: f32[1,32], index: 1, kind: input, shape index: {}]
  %s2 = inlined_call_operand.vmem [shape: f32[1,32], index: 2, kind: input, shape index: {}]
  %s3 = inlined_call_operand.hbm [shape: f32[16,32], index: 3, kind: output, shape index: {}]
  %s4 = sld [smem:[#allocation0]]
  $region26: #{tpu_custom_call.1} parent=0
    _
  %s6 = ssub.s32 1, %s4
  %s7 = scalar_select 0, %s6, %s4
  $region1: #{tpu_custom_call.1} parent=0
    #allocation2 [shape = 'u8[8192]{0}', space=vmem, size = 0x2000, scoped, tag = 'input window, operand 0, single buffered']
    #allocation3 [shape = 's32[1]{0}', space=sflag, size = 0x4, scoped, tag = 'scoped memory for tpu_custom_call.1']
    #allocation4 [shape = 's32[1]{0}', space=sflag, size = 0x4, scoped, tag = 'scoped memory for tpu_custom_call.1']
    #allocation5 [shape = 'u8[8192]{0}', space=vmem, size = 0x2000, scoped, tag = 'output window, operand 0, single buffered']
    %8 = vsyncpa [#allocation3], 0
    %9 = vsyncpa [#allocation4], 0
    // Predicated region
    $region2: #{tpu_custom_call.1} parent=1 // pred_check
      _
    $region3: #{tpu_custom_call.1} parent=1 // pred_check_branch
      %11 = sbr.rel (0) target = $region5
    $region4: #{tpu_custom_call.1} parent=1 // pred_region
      %s13 = ssub.s32 256, 256
      %14 = vsyncadd [#allocation3], %s13
      %s15 = sshll.u32 [#allocation2], 4
      %s16 = int_to_ptr.vmem [resolvable:$true] %s15
      %21 = dma.hbm_to_vmem [thread:$0]  %s0, 256, %s16, [#allocation3], 128, 128, 8
    $region5: #{tpu_custom_call.1} parent=1 // pred_fallthru
      _
    // Predicated region
    $region6: #{tpu_custom_call.1} parent=1 // pred_check
      _
    $region7: #{tpu_custom_call.1} parent=1 // pred_check_branch
      %23 = sbr.rel (0) target = $region9
    $region8: #{tpu_custom_call.1} parent=1 // pred_region
      _
    $region9: #{tpu_custom_call.1} parent=1 // pred_fallthru
      _
    // Predicated region
    $region10: #{tpu_custom_call.1} parent=1 // pred_check
      _
    $region11: #{tpu_custom_call.1} parent=1 // pred_check_branch
      %25 = sbr.rel (0) target = $region13
    $region12: #{tpu_custom_call.1} parent=1 // pred_region
      _
    $region13: #{tpu_custom_call.1} parent=1 // pred_fallthru
      _
    // Predicated region
    $region14: #{tpu_custom_call.1} parent=1 // pred_check
      _
    $region15: #{tpu_custom_call.1} parent=1 // pred_check_branch
      %27 = sbr.rel (0) target = $region17
    $region16: #{tpu_custom_call.1} parent=1 // pred_region
      %28 = dma.done [#allocation3], 256
    $region17: #{tpu_custom_call.1} parent=1 // pred_fallthru
      _
    %v29 = vld [vmem:[#allocation2] sm:$0xff]
    %v30 = vld [vmem:[#allocation2 + $0x8] sm:$0xff]
    %vm31 = vcmask 261120
    %v32 = vsel %vm31, %v29, 0.0
    %33 = vadd.xlane.f32.xlu0 %v32
    %v34 = vpop.xlane.xlu0 %33
    %v35 = vsel %vm31, %v30, 0.0
    %36 = vadd.xlane.f32.xlu0 %v35
    %v37 = vpop.xlane.xlu0 %36
    %v38 = vrcp.pop 32.0
    %v39 = vmul.f32 %v34, %v38
    %v40 = vmul.f32 %v37, %v38
    %v41 = vsub.f32 %v29, %v39
    %v42 = vsub.f32 %v30, %v40
    %v43 = vmul.f32 %v41, %v41
    %v44 = vmul.f32 %v42, %v42
    %v45 = vsel %vm31, %v43, 0.0
    %46 = vadd.xlane.f32.xlu0 %v45
    %v47 = vpop.xlane.xlu0 %46
    %v48 = vsel %vm31, %v44, 0.0
    %49 = vadd.xlane.f32.xlu0 %v48
    %v50 = vpop.xlane.xlu0 %49
    %v51 = vmul.f32 %v47, 0.032258064
    %v52 = vmul.f32 %v50, 0.032258064
    %v53 = vrsqrt.pop %v51
    %v54 = vmul.f32 %v51, %v53
    %vm55 = vcmp.eq.f32.partialorder %v51, inf
    %v56 = vsel %vm55, %v51, %v54
    %vm57 = vcmp.eq.f32.partialorder %v51, 0.0
    %v58 = vand.u32 %v51, 2147483648
    %v59 = vsel %vm57, %v58, %v56
    %v60 = vrsqrt.pop %v52
    %v61 = vmul.f32 %v52, %v60
    %vm62 = vcmp.eq.f32.partialorder %v52, inf
    %v63 = vsel %vm62, %v52, %v61
    %vm64 = vcmp.eq.f32.partialorder %v52, 0.0
    %v65 = vand.u32 %v52, 2147483648
    %v66 = vsel %vm64, %v65, %v63
    %v67 = vadd.f32 %v59, 1e-06
    %v68 = vadd.f32 %v66, 1e-06
    %v69 = vrcp.pop %v67
    %v70 = vmul.f32 1.0, %v69
    %v71 = vrcp.pop %v68
    %v72 = vmul.f32 1.0, %v71
    %v73 = vmul.f32 %v41, %v70
    %v74 = vmul.f32 %v42, %v72
    %v75 = vld [vmem:[%s1] sm:$0x1]
    %v77 = vlaneseq
    %v78 = vshrl.u32 %v77, 7
    %v79 = vsub.s32 0, %v78
    %v80 = vrot.slane %v75, %v79
    %v82 = vmul.f32 %v73, %v80
    %v83 = vmul.f32 %v74, %v80
    %v84 = vld [vmem:[%s2] sm:$0x1]
    %v86 = vlaneseq
    %v87 = vshrl.u32 %v86, 7
    %v88 = vsub.s32 0, %v87
    %v89 = vrot.slane %v84, %v88
    %v91 = vadd.f32 %v82, %v89
    %v92 = vadd.f32 %v83, %v89
    %93 = vst.msk [vmem:[#allocation5] sm:$0xff] %vm31, %v91
    %94 = vst.msk [vmem:[#allocation5 + $0x8] sm:$0xff] %vm31, %v92
    // Predicated region
    $region18: #{tpu_custom_call.1} parent=1 // pred_check
      _
    $region19: #{tpu_custom_call.1} parent=1 // pred_check_branch
      %96 = sbr.rel (0) target = $region21
    $region20: #{tpu_custom_call.1} parent=1 // pred_region
      %s98 = ssub.s32 256, 256
      %99 = vsyncadd [#allocation4], %s98
      %s100 = sshll.u32 [#allocation5], 4
      %s101 = int_to_ptr.vmem [resolvable:$true] %s100
      %106 = dma.vmem_to_hbm [thread:$0]  %s101, 256, %s3, [#allocation4], 128, 128, 8
    $region21: #{tpu_custom_call.1} parent=1 // pred_fallthru
      _
    // Predicated region
    $region22: #{tpu_custom_call.1} parent=1 // pred_check
      _
    $region23: #{tpu_custom_call.1} parent=1 // pred_check_branch
      %108 = sbr.rel (0) target = $region25
    $region24: #{tpu_custom_call.1} parent=1 // pred_region
      %109 = dma.done [#allocation4], 256
    $region25: #{tpu_custom_call.1} parent=1 // pred_fallthru
      _
    %110 = vsyncpa [#allocation3], 1
    %111 = vsyncpa [#allocation4], 1

</llo_original>
